<compile_context>
chip_gen: v7x
topology: tpu7x:2x2x1
jax: 0.10.0
libtpu: 0.0.40
codegen_flags: <defaults>
</compile_context>

<pallas_src>
import functools

import jax
import jax.numpy as jnp
from jax.experimental import pallas as pl
from jax.experimental.pallas import tpu as pltpu


# ---------------------------------------------------------------------------
# helpers
# ---------------------------------------------------------------------------
def _round_up(x, m):
    return (x + m - 1) // m * m


def _pad2d(x, rows, cols):
    r, c = x.shape
    return jnp.pad(x, ((0, rows - r), (0, cols - c)))


def tensor_normalize(adj):
    """JAX equivalent of the PyTorch tensor_normalize: diag(rowsum^-1) @ A."""
    row_sum = jnp.sum(adj, axis=1)
    r_inv = jnp.where(row_sum == 0.0, 0.0, 1.0 / row_sum)
    return r_inv[:, None] * adj


def _compiler_params(vmem_need_bytes, semantics):
    # Raise the scoped VMEM limit above the v5e/v6e defaults, but stay well
    # under v7x's 64 MiB physical VMEM.
    vmem = int(min(max(vmem_need_bytes + (4 << 20), 32 << 20), 48 << 20))
    return pltpu.CompilerParams(dimension_semantics=semantics,
                                vmem_limit_bytes=vmem)


# ---------------------------------------------------------------------------
# kernels
# ---------------------------------------------------------------------------
def _adj_kernel_final_f32(tk, resident_b, a_ref, b_ref, bias_ref, o_ref):
    """out = A @ B + bias, accumulating directly into the resident f32 o_ref.

    NOTE: correctness relies on the output BlockSpec index being constant
    along the K grid axis (axis 1), so the output block stays resident in
    VMEM across all K steps (accumulator pattern).  Do not reorder the grid
    or change the out index_map without reintroducing a scratch accumulator.
    """
    k = pl.program_id(1)

    @pl.when(k == 0)
    def _init():
        o_ref[...] = jnp.zeros_like(o_ref)

    if resident_b:  # B fully VMEM-resident: slice the current K window
        b = b_ref[pl.ds(pl.multiple_of(k * tk, tk), tk), :]
    else:           # B streamed per K tile
        b = b_ref[...]
    o_ref[...] += jnp.dot(a_ref[...], b, preferred_element_type=jnp.float32)

    @pl.when(k == pl.num_programs(1) - 1)
    def _finalize():
        o_ref[...] = o_ref[...] + bias_ref[...]


def _adj_kernel_bf16(tk, resident_b, a_ref, b_ref, o_ref, acc_ref):
    """out_bf16 = A @ B with an f32 scratch accumulator (no bias)."""
    k = pl.program_id(1)

    @pl.when(k == 0)
    def _init():
        acc_ref[...] = jnp.zeros_like(acc_ref)

    if resident_b:
        b = b_ref[pl.ds(pl.multiple_of(k * tk, tk), tk), :]
    else:
        b = b_ref[...]
    acc_ref[...] += jnp.dot(a_ref[...], b, preferred_element_type=jnp.float32)

    @pl.when(k == pl.num_programs(1) - 1)
    def _finalize():
        o_ref[...] = acc_ref[...].astype(o_ref.dtype)


def _dense_kernel_bias(x_ref, w_ref, bias_ref, o_ref):
    o_ref[...] = (jnp.dot(x_ref[...], w_ref[...],
                          preferred_element_type=jnp.float32)
                  + bias_ref[...]).astype(o_ref.dtype)


def _dense_kernel_nobias(x_ref, w_ref, o_ref):
    o_ref[...] = jnp.dot(x_ref[...], w_ref[...],
                         preferred_element_type=jnp.float32).astype(o_ref.dtype)


# ---------------------------------------------------------------------------
# pallas_call wrappers
# ---------------------------------------------------------------------------
def _tiled_adj_matmul(a_p, b_p, bias_p, tm, tk, out_dtype):
    """out[mp, fp] = a_p @ b_p (+ bias); a_p (mp,kp) / b_p (kp,fp) pre-padded bf16."""
    mp, kp = a_p.shape
    kp2, fp = b_p.shape
    assert kp == kp2 and mp % tm == 0 and kp % tk == 0

    out_bytes = jnp.dtype(out_dtype).itemsize
    final_f32 = out_dtype == jnp.float32

    # Keep the K x F operand fully VMEM-resident when it fits comfortably.
    resident_b = (2 * kp * fp * 2) <= (16 << 20)

    def vmem_need(tm_, tk_):
        b_bytes = 2 * kp * fp * 2 if resident_b else 2 * tk_ * fp * 2
        n = 2 * tm_ * tk_ * 2 + b_bytes + 2 * tm_ * fp * out_bytes
        if not final_f32:
            n += tm_ * fp * 4            # f32 scratch accumulator
        return n

    # Shrink tiles if the plan would not fit v7x's 64 MiB VMEM with headroom.
    budget = 44 << 20
    while vmem_need(tm, tk) > budget and tk > 256:
        tk //= 2
    while vmem_need(tm, tk) > budget and tm > 128:
        tm //= 2

    grid = (mp // tm, kp // tk)

    if resident_b:
        b_spec = pl.BlockSpec((kp, fp), lambda i, kk: (0, 0))    # fetched once
    else:
        b_spec = pl.BlockSpec((tk, fp), lambda i, kk: (kk, 0))   # streamed

    if final_f32:
        kernel = functools.partial(_adj_kernel_final_f32, tk, resident_b)
        in_specs = [
            pl.BlockSpec((tm, tk), lambda i, kk: (i, kk)),   # A tiles (streamed)
            b_spec,
            pl.BlockSpec((1, fp), lambda i, kk: (0, 0)),     # bias
        ]
        args = (a_p, b_p, bias_p)
        scratch = []
    else:
        kernel = functools.partial(_adj_kernel_bf16, tk, resident_b)
        in_specs = [
            pl.BlockSpec((tm, tk), lambda i, kk: (i, kk)),
            b_spec,
        ]
        args = (a_p, b_p)
        scratch = [pltpu.VMEM((tm, fp), jnp.float32)]

    return pl.pallas_call(
        kernel,
        out_shape=jax.ShapeDtypeStruct((mp, fp), out_dtype),
        grid=grid,
        in_specs=in_specs,
        out_specs=pl.BlockSpec((tm, fp), lambda i, kk: (i, 0)),
        scratch_shapes=scratch,
        compiler_params=_compiler_params(vmem_need(tm, tk),
                                         ("parallel", "arbitrary")),
    )(*args)


def _row_tiled_dense(x_p, w_p, bias_p, tile_m, out_dtype):
    """out[rows, fp] = x_p @ w_p (+ bias); x_p pre-padded bf16, W resident."""
    rows, kp = x_p.shape
    kp2, fp = w_p.shape
    assert kp == kp2

    tm = 128
    for cand in (tile_m, 1024, 512, 256, 128):
        if cand <= rows and rows % cand == 0:
            tm = cand
            break
    # prefer >= 2 row tiles when possible (v7x megacore)
    if rows // tm < 2:
        for cand in (512, 256, 128):
            if cand < tm and rows % cand == 0 and rows // cand >= 2:
                tm = cand
                break

    out_bytes = jnp.dtype(out_dtype).itemsize
    vmem_need = 2 * tm * kp * 2 + 2 * kp * fp * 2 + 2 * tm * fp * out_bytes

    in_specs = [
        pl.BlockSpec((tm, kp), lambda i: (i, 0)),   # X row tile
        pl.BlockSpec((kp, fp), lambda i: (0, 0)),   # W resident
    ]
    if bias_p is not None:
        in_specs.append(pl.BlockSpec((1, fp), lambda i: (0, 0)))
        args = (x_p, w_p, bias_p)
        kernel = _dense_kernel_bias
    else:
        args = (x_p, w_p)
        kernel = _dense_kernel_nobias

    return pl.pallas_call(
        kernel,
        out_shape=jax.ShapeDtypeStruct((rows, fp), out_dtype),
        grid=(rows // tm,),
        in_specs=in_specs,
        out_specs=pl.BlockSpec((tm, fp), lambda i: (i, 0)),
        compiler_params=_compiler_params(vmem_need, ("parallel",)),
    )(*args)


# ---------------------------------------------------------------------------
# GraphConvolution layer (forward only)
# ---------------------------------------------------------------------------
class GraphConvolution:
    """Pallas/JAX port of the pygcn GraphConvolution layer (forward pass)."""

    def __init__(self, in_features, out_features, adj_matrix, weight, bias=None,
                 attention_scores=None, *, tile_m=512, tile_k=1024):
        self.in_features = in_features
        self.out_features = out_features
        n = adj_matrix.shape[0]
        self.n = n

        adj = adj_matrix.astype(jnp.float32)
        if attention_scores is not None:
            adj = adj * attention_scores.astype(jnp.float32)
        adj_norm = tensor_normalize(adj)

        # ---- per-graph tile plan -------------------------------------------
        tm = min(_round_up(tile_m, 128), _round_up(n, 128))
        if _round_up(n, tm) // tm < 2 and n > 128:
            # >= 2 row tiles so the "parallel" axis shards across v7x's 2 TCs
            tm = _round_up(-(-n // 2), 128)
        tk = min(_round_up(tile_k, 256), _round_up(n, 256))   # 256-multiple K depth
        self.tm, self.tk = tm, tk
        self.mp = _round_up(n, tm)
        self.kp = _round_up(n, tk)
        self.tile_m = tile_m

        # Hoisted: the adjacency is a per-graph constant -> pad + cast to bf16
        # ONCE here instead of on every forward.
        self.adj_prep = _pad2d(adj_norm, self.mp, self.kp).astype(jnp.bfloat16)

        # f32 master parameters (reset_parameters-style init is done by caller)
        self.weight = weight.astype(jnp.float32)
        self.bias = None if bias is None else bias.astype(jnp.float32).reshape(-1)

    def __call__(self, x):
        return self.forward(x)

    def forward(self, x):
        n, f_in = x.shape
        assert n == self.n and f_in == self.in_features
        f_out = self.out_features

        f_in_p = _round_up(f_in, 128)
        f_out_p = _round_up(f_out, 128)

        bias = (jnp.zeros((f_out,), jnp.float32) if self.bias is None
                else self.bias)
        bias_p = _pad2d(bias.reshape(1, -1), 1, f_out_p)
        w_p = _pad2d(self.weight, f_in_p, f_out_p).astype(jnp.bfloat16)
        x_p = _pad2d(x.astype(jnp.float32), self.kp, f_in_p).astype(jnp.bfloat16)

        if f_in <= f_out:
            # (A @ X) @ W + bias : the O(N^2) matmul touches the narrower F_in.
            # Intermediate stays padded bf16 (no slice / re-pad / re-cast).
            t_p = _tiled_adj_matmul(self.adj_prep, x_p, None,
                                    self.tm, self.tk, jnp.bfloat16)
            out_p = _row_tiled_dense(t_p, w_p, bias_p, self.tile_m, jnp.float32)
        else:
            # A @ (X @ W) + bias : produce the narrower F_out first.
            support_p = _row_tiled_dense(x_p, w_p, None, self.tile_m,
                                         jnp.bfloat16)
            out_p = _tiled_adj_matmul(self.adj_prep, support_p, bias_p,
                                      self.tm, self.tk, jnp.float32)
        return out_p[:n, :f_out]


# ---------------------------------------------------------------------------
# demo
# ---------------------------------------------------------------------------
if __name__ == "__main__":
    N, IN_DIM, HID_DIM, OUT_DIM = 512, 64, 96, 32
    key = jax.random.PRNGKey(0)
    kx, kw1, kb1, kw2, kb2 = jax.random.split(key, 5)

    x = jax.random.normal(kx, (N, IN_DIM), jnp.float32)

    # deterministic graph: bidirectional ring + self loops
    src = jnp.arange(N, dtype=jnp.int32)
    dst = (src + 1) % N
    adj = jnp.zeros((N, N), jnp.float32)
    adj = adj.at[src, dst].set(1.0).at[dst, src].set(1.0).at[src, src].set(1.0)

    # reset_parameters(): uniform(-stdv, stdv) with stdv = 1/sqrt(out_features)
    def init_wb(kw, kb, fi, fo):
        stdv = 1.0 / (fo ** 0.5)
        w = jax.random.uniform(kw, (fi, fo), jnp.float32, -stdv, stdv)
        b = jax.random.uniform(kb, (fo,), jnp.float32, -stdv, stdv)
        return w, b

    w1, b1 = init_wb(kw1, kb1, IN_DIM, HID_DIM)
    w2, b2 = init_wb(kw2, kb2, HID_DIM, OUT_DIM)

    # tile_k=256 at this small N so the demo exercises the K-accumulation path
    # (adjacency grid = (2, 2)) plus the >=2-row-tile "parallel" axis.
    layer1 = GraphConvolution(IN_DIM, HID_DIM, adj, w1, b1,
                              tile_m=512, tile_k=256)   # f_in <= f_out branch
    layer2 = GraphConvolution(HID_DIM, OUT_DIM, adj, w2, b2,
                              tile_m=512, tile_k=256)   # f_in >  f_out branch

    out1 = jax.block_until_ready(layer1(x))
    out2 = jax.block_until_ready(layer2(out1))
    assert out1.shape == (N, HID_DIM) and out2.shape == (N, OUT_DIM)

    # --- correctness: compare against a bf16-emulated reference (tight tol) ---
    def bf16(a):
        return a.astype(jnp.bfloat16).astype(jnp.float32)

    adj_norm = tensor_normalize(adj)
    a_e = bf16(adj_norm)

    # layer1: (A @ X) in bf16 inputs / f32 acc -> bf16 intermediate -> @ W + b
    t_e = bf16(jnp.dot(a_e, bf16(x), preferred_element_type=jnp.float32))
    ref1 = jnp.dot(t_e, bf16(w1), preferred_element_type=jnp.float32) + b1
    # layer2: (out1 @ W) -> bf16 support -> A @ support + b
    s_e = bf16(jnp.dot(bf16(out1), bf16(w2), preferred_element_type=jnp.float32))
    ref2 = jnp.dot(a_e, s_e, preferred_element_type=jnp.float32) + b2

    err1 = float(jnp.max(jnp.abs(out1 - ref1)))
    err2 = float(jnp.max(jnp.abs(out2 - ref2)))
    assert err1 < 5e-3 and err2 < 5e-3, (err1, err2)

    # loose sanity check against the pure-f32 math of the original module
    ref1_f32 = adj_norm @ (x @ w1) + b1
    ref2_f32 = adj_norm @ (out1 @ w2) + b2
    assert float(jnp.max(jnp.abs(out1 - ref1_f32))) < 5e-2
    assert float(jnp.max(jnp.abs(out2 - ref2_f32))) < 5e-2

    print("KERNEL_OK")
</pallas_src>

<mosaic_0001>
module attributes {stable_mosaic.version = 11 : i64} {
  func.func @_adj_kernel_bf16(%arg0: i32, %arg1: i32, %arg2: memref<256x256xbf16, #tpu.memory_space<vmem>>, %arg3: memref<512x128xbf16, #tpu.memory_space<vmem>>, %arg4: memref<256x128xbf16, #tpu.memory_space<vmem>>, %arg5: memref<256x128xf32, #tpu.memory_space<vmem>>) attributes {dimension_semantics = [#tpu.dimension_semantics<parallel>, #tpu.dimension_semantics<arbitrary>], iteration_bounds = array<i64: 2, 2>, scalar_prefetch = 0 : i64, scratch_operands = 1 : i64, tpu.core_type = #tpu.core_type<tc>, window_params = [{transform_indices = @transform_0, window_bounds = array<i64: 256, 256>}, {pipeline_mode = #tpu.pipeline_mode<synchronous>, transform_indices = @transform_1, window_bounds = array<i64: 512, 128>}, {transform_indices = @transform_2, window_bounds = array<i64: 256, 128>}]} {
    %c0_i32 = arith.constant 0 : i32
    %0 = arith.cmpi eq, %arg1, %c0_i32 : i32
    %1 = arith.extui %0 : i1 to i32
    %c0_i32_0 = arith.constant 0 : i32
    %2 = arith.cmpi ne, %1, %c0_i32_0 : i32
    scf.if %2 {
      %cst_8 = arith.constant 0.000000e+00 : f32
      %15 = vector.broadcast %cst_8 : f32 to vector<256x128xf32>
      %c0_9 = arith.constant 0 : index
      %c0_10 = arith.constant 0 : index
      %16 = vector.load %arg5[%c0_9, %c0_10] : memref<256x128xf32, #tpu.memory_space<vmem>>, vector<256x128xf32>
      tpu.vector_store %arg5[%c0_9, %c0_10], %15 {strides = array<i32>} : memref<256x128xf32, #tpu.memory_space<vmem>>, vector<256x128xf32>,
    } else {
    }
    %c256_i32 = arith.constant 256 : i32
    %3 = arith.muli %arg1, %c256_i32 : i32
    %4 = tpu.assume_multiple %3, 256 : i32
    %5 = arith.index_cast %4 : i32 to index
    %c0 = arith.constant 0 : index
    %6 = vector.load %arg3[%5, %c0] : memref<512x128xbf16, #tpu.memory_space<vmem>>, vector<256x128xbf16>
    %c0_1 = arith.constant 0 : index
    %c0_2 = arith.constant 0 : index
    %7 = vector.load %arg5[%c0_1, %c0_2] : memref<256x128xf32, #tpu.memory_space<vmem>>, vector<256x128xf32>
    %c0_3 = arith.constant 0 : index
    %c0_4 = arith.constant 0 : index
    %8 = vector.load %arg2[%c0_3, %c0_4] : memref<256x256xbf16, #tpu.memory_space<vmem>>, vector<256x256xbf16>
    %cst = arith.constant dense<0.000000e+00> : vector<256x128xf32>
    %9 = tpu.matmul %8, %6, %cst {dimension_numbers = #tpu.dot_dimension_numbers<[1], [0], [0], [1], [0, 0, 1, 1], [], []>} : vector<256x256xbf16>, vector<256x128xbf16>, vector<256x128xf32> -> vector<256x128xf32>
    %10 = arith.addf %7, %9 : vector<256x128xf32>
    %c0_5 = arith.constant 0 : index
    %c0_6 = arith.constant 0 : index
    %11 = vector.load %arg5[%c0_5, %c0_6] : memref<256x128xf32, #tpu.memory_space<vmem>>, vector<256x128xf32>
    tpu.vector_store %arg5[%c0_5, %c0_6], %10 {strides = array<i32>} : memref<256x128xf32, #tpu.memory_space<vmem>>, vector<256x128xf32>,
    %c1_i32 = arith.constant 1 : i32
    %12 = arith.cmpi eq, %arg1, %c1_i32 : i32
    %13 = arith.extui %12 : i1 to i32
    %c0_i32_7 = arith.constant 0 : i32
    %14 = arith.cmpi ne, %13, %c0_i32_7 : i32
    scf.if %14 {
      %c0_8 = arith.constant 0 : index
      %c0_9 = arith.constant 0 : index
      %15 = vector.load %arg5[%c0_8, %c0_9] : memref<256x128xf32, #tpu.memory_space<vmem>>, vector<256x128xf32>
      %16 = arith.truncf %15 : vector<256x128xf32> to vector<256x128xbf16>
      %c0_10 = arith.constant 0 : index
      %c0_11 = arith.constant 0 : index
      %17 = vector.load %arg4[%c0_10, %c0_11] : memref<256x128xbf16, #tpu.memory_space<vmem>>, vector<256x128xbf16>
      tpu.vector_store %arg4[%c0_10, %c0_11], %16 {strides = array<i32>} : memref<256x128xbf16, #tpu.memory_space<vmem>>, vector<256x128xbf16>,
    } else {
    }
    return
  }
  func.func @transform_0(%arg0: i32, %arg1: i32) -> (i32, i32) {
    %c0_i32 = arith.constant 0 : i32
    return %arg0, %arg1 : i32, i32
  }
  func.func @transform_1(%arg0: i32, %arg1: i32) -> (i32, i32) {
    %c0_i32 = arith.constant 0 : i32
    %c0_i32_0 = arith.constant 0 : i32
    %c0_i32_1 = arith.constant 0 : i32
    return %c0_i32, %c0_i32_0 : i32, i32
  }
  func.func @transform_2(%arg0: i32, %arg1: i32) -> (i32, i32) {
    %c0_i32 = arith.constant 0 : i32
    %c0_i32_0 = arith.constant 0 : i32
    return %arg0, %c0_i32 : i32, i32
  }
}

</mosaic_0001>

<llo_original>
// kernel: tpu_custom_call.1
$region0: #{tpu_custom_call.1}
  #allocation0 [shape = 'u32[]', space=smem, size = 0x4, offset = 0x4, fixed_abs, tag = 'smem constant byte address 0x4 - core index']
  #allocation1 [shape = 'u32[144,128]{1,0:T(1,128)}', space=vmem, size = 0x12000, scoped, tag = 'internal scratch']
  #allocation2 [shape = 'f32[256,128]{1,0:T(8,128)}', space=vmem, size = 0x20000, scoped, tag = 'scratch operand']
  %s0 = inlined_call_operand.hbm [shape: bf16[512,512], index: 0, kind: input, shape index: {}]
  %s1 = inlined_call_operand.hbm [shape: bf16[512,128], index: 1, kind: input, shape index: {}]
  %s2 = inlined_call_operand.hbm [shape: bf16[512,128], index: 2, kind: output, shape index: {}]
  %s3 = sld [smem:[#allocation0]]
  $region57: #{tpu_custom_call.1} parent=0
    _
  %s5 = ssub.s32 1, %s3
  %s6 = scalar_select 0, %s5, %s3
  $region1: #{tpu_custom_call.1} parent=0
    #allocation3 [shape = 'u8[262144]{0}', space=vmem, size = 0x40000, scoped, tag = 'input window, operand 0']
    #allocation4 [shape = 's32[2]{0}', space=sflag, size = 0x8, scoped, tag = 'scoped memory for tpu_custom_call.1']
    #allocation5 [shape = 's32[2]{0}', space=sflag, size = 0x8, scoped, tag = 'scoped memory for tpu_custom_call.1']
    #allocation6 [shape = 'u8[131072]{0}', space=vmem, size = 0x20000, scoped, tag = 'input window, operand 1, single buffered']
    #allocation7 [shape = 's32[1]{0}', space=sflag, size = 0x4, scoped, tag = 'scoped memory for tpu_custom_call.1']
    #allocation8 [shape = 'u8[131072]{0}', space=vmem, size = 0x20000, scoped, tag = 'output window, operand 0']
    %7 = vsyncpa [#allocation4], 0
    %s8 = scalar_lea.sflag [#allocation4], 1
    %9 = vsyncpa %s8, 0
    %10 = vsyncpa [#allocation7], 0
    %11 = vsyncpa [#allocation5], 0
    %s12 = scalar_lea.sflag [#allocation5], 1
    %13 = vsyncpa %s12, 0
    loop: start=0, step=1, limit=6
    $region2: #{tpu_custom_call.1} parent=1 // loop_pre_header
      _
    $region3: #{tpu_custom_call.1} parent=1 // loop_header
      %s15 = sphi 0, %s19
      %p16 = scmp.ge.s32.totalorder %s15, 6
      %s22 = sphi 0, %s34
      %s23 = sphi 0, %s30
      %s24 = sphi 0, %s22
      %s25 = sphi 0, %s23
      %s26 = sphi 0, %s24
      %s27 = sphi 0, %s25
      %s39 = sphi 0, %s41
      %s42 = sphi 0, %s39
      %s43 = sphi 0, %s42
      %s59 = sphi 0, %s43
      %s63 = sphi 0, %s63
      %s65 = sphi 0, %s63
      %s66 = sphi 0, %s65
      %s80 = sphi 0, %s66
      %s86 = sphi 0, %s88
      %s89 = sphi 0, %s86
      %s90 = sphi 0, %s89
      %s106 = sphi 0, %s90
    $region4: #{tpu_custom_call.1} parent=1 // loop_header_branch
      %18 = sbr.rel (%p16) target = $region8
    $region5: #{tpu_custom_call.1} parent=1 // loop_body
      %s20 = ssub.s32 %s15, 1
      %s21 = ssub.s32 %s15, 2
      %s28 = sadd.s32 1, %s23
      %p29 = scmp.ge.s32.totalorder %s28, 2
      %s30 = scalar_select %p29, 0, %s28
      %s31 = sadd.s32 1, %s22
      %s32 = scalar_select %p29, %s31, %s22
      %p33 = scmp.ge.s32.totalorder %s32, 2
      %s34 = scalar_select %p33, 0, %s32
      %s35 = ssub.s32 %s22, %s34
      %s36 = ssub.s32 %s23, %s30
      %s37 = sor.u32 %s35, %s36
      %p38 = scmp.eq.s32.totalorder %s37, 0
      %s40 = sadd.s32 %s39, 1
      %s41 = scalar_select %p38, %s39, %s40
      %p44 = pneg %p38
      %p45 = scmp.eq.s32.totalorder %s15, 3
      %p46 = por %p44, %p45
      %p47 = scmp.ne.s32.totalorder %s39, %s42
      %p48 = scmp.eq.s32.totalorder %s15, 0
      %p49 = por %p47, %p48
      %p50 = scmp.ne.s32.totalorder %s39, %s42
      %p51 = scmp.eq.s32.totalorder %s20, 3
      %p52 = por %p50, %p51
      %p53 = scmp.ne.s32.totalorder %s42, %s43
      %p54 = scmp.eq.s32.totalorder %s20, 0
      %p55 = por %p53, %p54
      %p56 = scmp.ne.s32.totalorder %s42, %s43
      %p57 = scmp.eq.s32.totalorder %s21, 3
      %p58 = por %p56, %p57
      %p60 = scmp.ne.s32.totalorder %s43, %s59
      %p61 = scmp.eq.s32.totalorder %s21, 0
      %p62 = por %p60, %p61
      %s64 = sadd.s32 %s63, 1
      %p67 = scmp.eq.s32.totalorder %s15, 3
      %p68 = scmp.ne.s32.totalorder %s63, %s65
      %p69 = scmp.eq.s32.totalorder %s15, 0
      %p70 = por %p68, %p69
      %p71 = scmp.ne.s32.totalorder %s63, %s65
      %p72 = scmp.eq.s32.totalorder %s20, 3
      %p73 = por %p71, %p72
      %p74 = scmp.ne.s32.totalorder %s65, %s66
      %p75 = scmp.eq.s32.totalorder %s20, 0
      %p76 = por %p74, %p75
      %p77 = scmp.ne.s32.totalorder %s65, %s66
      %p78 = scmp.eq.s32.totalorder %s21, 3
      %p79 = por %p77, %p78
      %p81 = scmp.ne.s32.totalorder %s66, %s80
      %p82 = scmp.eq.s32.totalorder %s21, 0
      %p83 = por %p81, %p82
      %s84 = ssub.s32 %s22, %s34
      %p85 = scmp.eq.s32.totalorder %s84, 0
      %s87 = sadd.s32 %s86, 1
      %s88 = scalar_select %p85, %s86, %s87
      %p91 = pneg %p85
      %p92 = scmp.eq.s32.totalorder %s15, 3
      %p93 = por %p91, %p92
      %p94 = scmp.ne.s32.totalorder %s86, %s89
      %p95 = scmp.eq.s32.totalorder %s15, 0
      %p96 = por %p94, %p95
      %p97 = scmp.ne.s32.totalorder %s86, %s89
      %p98 = scmp.eq.s32.totalorder %s20, 3
      %p99 = por %p97, %p98
      %p100 = scmp.ne.s32.totalorder %s89, %s90
      %p101 = scmp.eq.s32.totalorder %s20, 0
      %p102 = por %p100, %p101
      %p103 = scmp.ne.s32.totalorder %s89, %s90
      %p104 = scmp.eq.s32.totalorder %s21, 3
      %p105 = por %p103, %p104
      %p107 = scmp.ne.s32.totalorder %s90, %s106
      %p108 = scmp.eq.s32.totalorder %s21, 0
      %p109 = por %p107, %p108
      %p110 = scmp.le.s32.totalorder 1, %s15
      %p111 = scmp.lt.s32.totalorder %s15, 5
      %p112 = pnand %p110, %p111
      %p113 = pneg %p112
      // Predicated region
      $region9: #{tpu_custom_call.1} parent=5 // pred_check
        _
      $region10: #{tpu_custom_call.1} parent=5 // pred_check_branch
        %115 = sbr.rel (%p112) target = $region12
      $region11: #{tpu_custom_call.1} parent=5 // pred_region
        %s116 = ssub.s32 %s15, 1
        // Predicated region
        $region13: #{tpu_custom_call.1} parent=11 // pred_check
          %p117 = pneg %p76
        $region14: #{tpu_custom_call.1} parent=11 // pred_check_branch
          %119 = sbr.rel (%p117) target = $region16
        $region15: #{tpu_custom_call.1} parent=11 // pred_region
          %s121 = ssub.s32 4096, 4096
          %122 = vsyncadd [#allocation7], %s121
          %s123 = sshll.u32 [#allocation6], 4
          %s124 = int_to_ptr.vmem [resolvable:$true] %s123
          %129 = dma.hbm_to_vmem [thread:$0]  %s1, 4096, %s124, [#allocation7], 64, 64, 4
        $region16: #{tpu_custom_call.1} parent=11 // pred_fallthru
          _
      $region12: #{tpu_custom_call.1} parent=5 // pred_fallthru
        _
      %p130 = scmp.lt.s32.totalorder %s15, 4
      // Predicated region
      $region17: #{tpu_custom_call.1} parent=5 // pred_check
        %p131 = pneg %p130
      $region18: #{tpu_custom_call.1} parent=5 // pred_check_branch
        %133 = sbr.rel (%p131) target = $region20
      $region19: #{tpu_custom_call.1} parent=5 // pred_region
        // Predicated region
        $region21: #{tpu_custom_call.1} parent=19 // pred_check
          %p134 = pneg %p49
        $region22: #{tpu_custom_call.1} parent=19 // pred_check_branch
          %136 = sbr.rel (%p134) target = $region24
        $region23: #{tpu_custom_call.1} parent=19 // pred_region
          %s137 = sand.u32 %s39, 1
          %s138 = scalar_lea.sflag [#allocation4], %s137
          %s139 = sand.u32 %s39, 1
          %s140 = smul.addr %s139, 256
          %s141 = scalar_lea.vmem [#allocation3], %s140
          %s142 = smul.u32 32, %s22
          %s143 = smul.u32 2, %s23
          %s145 = ssub.s32 4096, 4096
          %146 = vsyncadd %s138, %s145
          %s147 = smul.addr %s142, 4
          %s148 = sadd.s32 %s143, %s147
          %s149 = smul.addr %s148, 64
          %s150 = scalar_lea.hbm %s0, %s149
          %s151 = sshll.u32 %s141, 4
          %s152 = int_to_ptr.vmem [resolvable:$true] %s151
          %157 = dma.hbm_to_vmem [thread:$0]  %s150, 4096, %s152, %s138, 256, 128, 8
        $region24: #{tpu_custom_call.1} parent=19 // pred_fallthru
          _
      $region20: #{tpu_custom_call.1} parent=5 // pred_fallthru
        _
      %p158 = scmp.le.s32.totalorder 1, %s15
      %p159 = scmp.lt.s32.totalorder %s15, 5
      %p160 = pnand %p158, %p159
      %p161 = pneg %p160
      // Predicated region
      $region25: #{tpu_custom_call.1} parent=5 // pred_check
        _
      $region26: #{tpu_custom_call.1} parent=5 // pred_check_branch
        %163 = sbr.rel (%p160) target = $region28
      $region27: #{tpu_custom_call.1} parent=5 // pred_region
        %s164 = ssub.s32 %s15, 1
        %s165 = sand.u32 %s42, 1
        %s166 = scalar_lea.sflag [#allocation4], %s165
        %s167 = sand.u32 %s42, 1
        %s168 = smul.addr %s167, 256
        %s169 = scalar_lea.vmem [#allocation3], %s168
        // Predicated region
        $region29: #{tpu_custom_call.1} parent=27 // pred_check
          %p170 = pneg %p55
        $region30: #{tpu_custom_call.1} parent=27 // pred_check_branch
          %172 = sbr.rel (%p170) target = $region32
        $region31: #{tpu_custom_call.1} parent=27 // pred_region
          %173 = dma.done %s166, 4096
        $region32: #{tpu_custom_call.1} parent=27 // pred_fallthru
          _
        // Predicated region
        $region33: #{tpu_custom_call.1} parent=27 // pred_check
          %p174 = pneg %p76
        $region34: #{tpu_custom_call.1} parent=27 // pred_check_branch
          %176 = sbr.rel (%p174) target = $region36
        $region35: #{tpu_custom_call.1} parent=27 // pred_region
          %177 = dma.done [#allocation7], 4096
        $region36: #{tpu_custom_call.1} parent=27 // pred_fallthru
          _
        %s178 = sand.u32 %s42, 1
        %s179 = scalar_lea.sflag [#allocation4], %s178
        %s180 = sand.u32 %s42, 1
        %s181 = smul.addr %s180, 256
        %s182 = scalar_lea.vmem [#allocation3], %s181
        %p183 = pneg %p55
        %p184 = pneg %p52
        %p185 = pneg %p76
        %p186 = pneg %p73
        %p187 = pneg %p102
        %p188 = pneg %p99
        %s189 = sand.u32 %s89, 1
        %s190 = scalar_lea.sflag [#allocation5], %s189
        %s191 = sand.u32 %s89, 1
        %s192 = smul.addr %s191, 128
        %s193 = scalar_lea.vmem [#allocation8], %s192
        %s194 = smul.u32 32, %s24
        %s195 = smul.u32 2, %s25
        %s196 = smul.u32 32, %s24
        %p198 = scmp.eq.s32.totalorder %s25, 0
        // Predicated region
        $region37: #{tpu_custom_call.1} parent=27 // pred_check
          %p199 = pneg %p198
        $region38: #{tpu_custom_call.1} parent=27 // pred_check_branch
          %201 = sbr.rel (%p199) target = $region40
        $region39: #{tpu_custom_call.1} parent=27 // pred_region
          %202 = vst [vmem:[#allocation2] sm:$0xff] 0.0
          %203 = vst [vmem:[#allocation2 + $0x8] sm:$0xff] 0.0
          %204 = vst [vmem:[#allocation2 + $0x10] sm:$0xff] 0.0
          %205 = vst [vmem:[#allocation2 + $0x18] sm:$0xff] 0.0
          %206 = vst [vmem:[#allocation2 + $0x20] sm:$0xff] 0.0
          %207 = vst [vmem:[#allocation2 + $0x28] sm:$0xff] 0.0
          %208 = vst [vmem:[#allocation2 + $0x30] sm:$0xff] 0.0
          %209 = vst [vmem:[#allocation2 + $0x38] sm:$0xff] 0.0
          %210 = vst [vmem:[#allocation2 + $0x40] sm:$0xff] 0.0
          %211 = vst [vmem:[#allocation2 + $0x48] sm:$0xff] 0.0
          %212 = vst [vmem:[#allocation2 + $0x50] sm:$0xff] 0.0
          %213 = vst [vmem:[#allocation2 + $0x58] sm:$0xff] 0.0
          %214 = vst [vmem:[#allocation2 + $0x60] sm:$0xff] 0.0
          %215 = vst [vmem:[#allocation2 + $0x68] sm:$0xff] 0.0
          %216 = vst [vmem:[#allocation2 + $0x70] sm:$0xff] 0.0
          %217 = vst [vmem:[#allocation2 + $0x78] sm:$0xff] 0.0
          %218 = vst [vmem:[#allocation2 + $0x80] sm:$0xff] 0.0
          %219 = vst [vmem:[#allocation2 + $0x88] sm:$0xff] 0.0
          %220 = vst [vmem:[#allocation2 + $0x90] sm:$0xff] 0.0
          %221 = vst [vmem:[#allocation2 + $0x98] sm:$0xff] 0.0
          %222 = vst [vmem:[#allocation2 + $0xa0] sm:$0xff] 0.0
          %223 = vst [vmem:[#allocation2 + $0xa8] sm:$0xff] 0.0
          %224 = vst [vmem:[#allocation2 + $0xb0] sm:$0xff] 0.0
          %225 = vst [vmem:[#allocation2 + $0xb8] sm:$0xff] 0.0
          %226 = vst [vmem:[#allocation2 + $0xc0] sm:$0xff] 0.0
          %227 = vst [vmem:[#allocation2 + $0xc8] sm:$0xff] 0.0
          %228 = vst [vmem:[#allocation2 + $0xd0] sm:$0xff] 0.0
          %229 = vst [vmem:[#allocation2 + $0xd8] sm:$0xff] 0.0
          %230 = vst [vmem:[#allocation2 + $0xe0] sm:$0xff] 0.0
          %231 = vst [vmem:[#allocation2 + $0xe8] sm:$0xff] 0.0
          %232 = vst [vmem:[#allocation2 + $0xf0] sm:$0xff] 0.0
          %233 = vst [vmem:[#allocation2 + $0xf8] sm:$0xff] 0.0
        $region40: #{tpu_custom_call.1} parent=27 // pred_fallthru
          _
        %s234 = smul.u32 %s25, 256
        %s235 = sshra.s32 %s234, 3
        %s236 = sand.u32 %s234, 7
        %s237 = smul.addr %s235, 4
        %s238 = scalar_lea.vmem [#allocation6], %s237
        %v239 = vld [vmem:[%s238] sm:$0xf]
        %v240 = vld [vmem:[%s238 + $0x4] sm:$0xf]
        %v241 = vld [vmem:[%s238 + $0x8] sm:$0xf]
        %v242 = vld [vmem:[%s238 + $0xc] sm:$0xf]
        %v243 = vld [vmem:[%s238 + $0x10] sm:$0xf]
        %v244 = vld [vmem:[%s238 + $0x14] sm:$0xf]
        %v245 = vld [vmem:[%s238 + $0x18] sm:$0xf]
        %v246 = vld [vmem:[%s238 + $0x1c] sm:$0xf]
        %v247 = vld [vmem:[%s238 + $0x20] sm:$0xf]
        %v248 = vld [vmem:[%s238 + $0x24] sm:$0xf]
        %v249 = vld [vmem:[%s238 + $0x28] sm:$0xf]
        %v250 = vld [vmem:[%s238 + $0x2c] sm:$0xf]
        %v251 = vld [vmem:[%s238 + $0x30] sm:$0xf]
        %v252 = vld [vmem:[%s238 + $0x34] sm:$0xf]
        %v253 = vld [vmem:[%s238 + $0x38] sm:$0xf]
        %v254 = vld [vmem:[%s238 + $0x3c] sm:$0xf]
        %v255 = vld [vmem:[%s238 + $0x40] sm:$0xf]
        %v256 = vld [vmem:[%s238 + $0x44] sm:$0xf]
        %v257 = vld [vmem:[%s238 + $0x48] sm:$0xf]
        %v258 = vld [vmem:[%s238 + $0x4c] sm:$0xf]
        %v259 = vld [vmem:[%s238 + $0x50] sm:$0xf]
        %v260 = vld [vmem:[%s238 + $0x54] sm:$0xf]
        %v261 = vld [vmem:[%s238 + $0x58] sm:$0xf]
        %v262 = vld [vmem:[%s238 + $0x5c] sm:$0xf]
        %v263 = vld [vmem:[%s238 + $0x60] sm:$0xf]
        %v264 = vld [vmem:[%s238 + $0x64] sm:$0xf]
        %v265 = vld [vmem:[%s238 + $0x68] sm:$0xf]
        %v266 = vld [vmem:[%s238 + $0x6c] sm:$0xf]
        %v267 = vld [vmem:[%s238 + $0x70] sm:$0xf]
        %v268 = vld [vmem:[%s238 + $0x74] sm:$0xf]
        %v269 = vld [vmem:[%s238 + $0x78] sm:$0xf]
        %v270 = vld [vmem:[%s238 + $0x7c] sm:$0xf]
        %v271 = vld [vmem:[#allocation2] sm:$0xff]
        %v272 = vld [vmem:[#allocation2 + $0x8] sm:$0xff]
        %v273 = vld [vmem:[#allocation2 + $0x10] sm:$0xff]
        %v274 = vld [vmem:[#allocation2 + $0x18] sm:$0xff]
        %v275 = vld [vmem:[#allocation2 + $0x20] sm:$0xff]
        %v276 = vld [vmem:[#allocation2 + $0x28] sm:$0xff]
        %v277 = vld [vmem:[#allocation2 + $0x30] sm:$0xff]
        %v278 = vld [vmem:[#allocation2 + $0x38] sm:$0xff]
        %v279 = vld [vmem:[#allocation2 + $0x40] sm:$0xff]
        %v280 = vld [vmem:[#allocation2 + $0x48] sm:$0xff]
        %v281 = vld [vmem:[#allocation2 + $0x50] sm:$0xff]
        %v282 = vld [vmem:[#allocation2 + $0x58] sm:$0xff]
        %v283 = vld [vmem:[#allocation2 + $0x60] sm:$0xff]
        %v284 = vld [vmem:[#allocation2 + $0x68] sm:$0xff]
        %v285 = vld [vmem:[#allocation2 + $0x70] sm:$0xff]
        %v286 = vld [vmem:[#allocation2 + $0x78] sm:$0xff]
        %v287 = vld [vmem:[#allocation2 + $0x80] sm:$0xff]
        %v288 = vld [vmem:[#allocation2 + $0x88] sm:$0xff]
        %v289 = vld [vmem:[#allocation2 + $0x90] sm:$0xff]
        %v290 = vld [vmem:[#allocation2 + $0x98] sm:$0xff]
        %v291 = vld [vmem:[#allocation2 + $0xa0] sm:$0xff]
        %v292 = vld [vmem:[#allocation2 + $0xa8] sm:$0xff]
        %v293 = vld [vmem:[#allocation2 + $0xb0] sm:$0xff]
        %v294 = vld [vmem:[#allocation2 + $0xb8] sm:$0xff]
        %v295 = vld [vmem:[#allocation2 + $0xc0] sm:$0xff]
        %v296 = vld [vmem:[#allocation2 + $0xc8] sm:$0xff]
        %v297 = vld [vmem:[#allocation2 + $0xd0] sm:$0xff]
        %v298 = vld [vmem:[#allocation2 + $0xd8] sm:$0xff]
        %v299 = vld [vmem:[#allocation2 + $0xe0] sm:$0xff]
        %v300 = vld [vmem:[#allocation2 + $0xe8] sm:$0xff]
        %v301 = vld [vmem:[#allocation2 + $0xf0] sm:$0xff]
        %v302 = vld [vmem:[#allocation2 + $0xf8] sm:$0xff]
        %v303 = vld [vmem:[%s169] sm:$0xff]
        %v304 = vld [vmem:[%s169 + $0x8] sm:$0xff]
        %v305 = vld [vmem:[%s169 + $0x10] sm:$0xff]
        %v306 = vld [vmem:[%s169 + $0x18] sm:$0xff]
        %v307 = vld [vmem:[%s169 + $0x20] sm:$0xff]
        %v308 = vld [vmem:[%s169 + $0x28] sm:$0xff]
        %v309 = vld [vmem:[%s169 + $0x30] sm:$0xff]
        %v310 = vld [vmem:[%s169 + $0x38] sm:$0xff]
        %v311 = vld [vmem:[%s169 + $0x40] sm:$0xff]
        %v312 = vld [vmem:[%s169 + $0x48] sm:$0xff]
        %v313 = vld [vmem:[%s169 + $0x50] sm:$0xff]
        %v314 = vld [vmem:[%s169 + $0x58] sm:$0xff]
        %v315 = vld [vmem:[%s169 + $0x60] sm:$0xff]
        %v316 = vld [vmem:[%s169 + $0x68] sm:$0xff]
        %v317 = vld [vmem:[%s169 + $0x70] sm:$0xff]
        %v318 = vld [vmem:[%s169 + $0x78] sm:$0xff]
        %v319 = vld [vmem:[%s169 + $0x80] sm:$0xff]
        %v320 = vld [vmem:[%s169 + $0x88] sm:$0xff]
        %v321 = vld [vmem:[%s169 + $0x90] sm:$0xff]
        %v322 = vld [vmem:[%s169 + $0x98] sm:$0xff]
        %v323 = vld [vmem:[%s169 + $0xa0] sm:$0xff]
        %v324 = vld [vmem:[%s169 + $0xa8] sm:$0xff]
        %v325 = vld [vmem:[%s169 + $0xb0] sm:$0xff]
        %v326 = vld [vmem:[%s169 + $0xb8] sm:$0xff]
        %v327 = vld [vmem:[%s169 + $0xc0] sm:$0xff]
        %v328 = vld [vmem:[%s169 + $0xc8] sm:$0xff]
        %v329 = vld [vmem:[%s169 + $0xd0] sm:$0xff]
        %v330 = vld [vmem:[%s169 + $0xd8] sm:$0xff]
        %v331 = vld [vmem:[%s169 + $0xe0] sm:$0xff]
        %v332 = vld [vmem:[%s169 + $0xe8] sm:$0xff]
        %v333 = vld [vmem:[%s169 + $0xf0] sm:$0xff]
        %v334 = vld [vmem:[%s169 + $0xf8] sm:$0xff]
        %v367 = vunpack.c.l.b16 %v303
        %v368 = vunpack.c.h.b16 %v303
        %v369 = vunpack.c.l.b16 %v304
        %v370 = vunpack.c.h.b16 %v304
        %v371 = vunpack.c.l.b16 %v305
        %v372 = vunpack.c.h.b16 %v305
        %v373 = vunpack.c.l.b16 %v306
        %v374 = vunpack.c.h.b16 %v306
        %v375 = vunpack.c.l.b16 %v307
        %v376 = vunpack.c.h.b16 %v307
        %v377 = vunpack.c.l.b16 %v308
        %v378 = vunpack.c.h.b16 %v308
        %v379 = vunpack.c.l.b16 %v309
        %v380 = vunpack.c.h.b16 %v309
        %v381 = vunpack.c.l.b16 %v310
        %v382 = vunpack.c.h.b16 %v310
        %v383 = vunpack.c.l.b16 %v311
        %v384 = vunpack.c.h.b16 %v311
        %v385 = vunpack.c.l.b16 %v312
        %v386 = vunpack.c.h.b16 %v312
        %v387 = vunpack.c.l.b16 %v313
        %v388 = vunpack.c.h.b16 %v313
        %v389 = vunpack.c.l.b16 %v314
        %v390 = vunpack.c.h.b16 %v314
        %v391 = vunpack.c.l.b16 %v315
        %v392 = vunpack.c.h.b16 %v315
        %v393 = vunpack.c.l.b16 %v316
        %v394 = vunpack.c.h.b16 %v316
        %v395 = vunpack.c.l.b16 %v317
        %v396 = vunpack.c.h.b16 %v317
        %v397 = vunpack.c.l.b16 %v318
        %v398 = vunpack.c.h.b16 %v318
        %v399 = vunpack.c.l.b16 %v319
        %v400 = vunpack.c.h.b16 %v319
        %v401 = vunpack.c.l.b16 %v320
        %v402 = vunpack.c.h.b16 %v320
        %v403 = vunpack.c.l.b16 %v321
        %v404 = vunpack.c.h.b16 %v321
        %v405 = vunpack.c.l.b16 %v322
        %v406 = vunpack.c.h.b16 %v322
        %v407 = vunpack.c.l.b16 %v323
        %v408 = vunpack.c.h.b16 %v323
        %v409 = vunpack.c.l.b16 %v324
        %v410 = vunpack.c.h.b16 %v324
        %v411 = vunpack.c.l.b16 %v325
        %v412 = vunpack.c.h.b16 %v325
        %v413 = vunpack.c.l.b16 %v326
        %v414 = vunpack.c.h.b16 %v326
        %v415 = vunpack.c.l.b16 %v327
        %v416 = vunpack.c.h.b16 %v327
        %v417 = vunpack.c.l.b16 %v328
        %v418 = vunpack.c.h.b16 %v328
        %v419 = vunpack.c.l.b16 %v329
        %v420 = vunpack.c.h.b16 %v329
        %v421 = vunpack.c.l.b16 %v330
        %v422 = vunpack.c.h.b16 %v330
        %v423 = vunpack.c.l.b16 %v331
        %v424 = vunpack.c.h.b16 %v331
        %v425 = vunpack.c.l.b16 %v332
        %v426 = vunpack.c.h.b16 %v332
        %v427 = vunpack.c.l.b16 %v333
        %v428 = vunpack.c.h.b16 %v333
        %v429 = vunpack.c.l.b16 %v334
        %v430 = vunpack.c.h.b16 %v334
        %v431 = vpack.c.b16 %v369, %v367
        %v432 = vpack.c.b16 %v370, %v368
        %v433 = vpack.c.b16 %v373, %v371
        %v434 = vpack.c.b16 %v374, %v372
        %v435 = vpack.c.b16 %v377, %v375
        %v436 = vpack.c.b16 %v378, %v376
        %v437 = vpack.c.b16 %v381, %v379
        %v438 = vpack.c.b16 %v382, %v380
        %v439 = vpack.c.b16 %v385, %v383
        %v440 = vpack.c.b16 %v386, %v384
        %v441 = vpack.c.b16 %v389, %v387
        %v442 = vpack.c.b16 %v390, %v388
        %v443 = vpack.c.b16 %v393, %v391
        %v444 = vpack.c.b16 %v394, %v392
        %v445 = vpack.c.b16 %v397, %v395
        %v446 = vpack.c.b16 %v398, %v396
        %v447 = vpack.c.b16 %v401, %v399
        %v448 = vpack.c.b16 %v402, %v400
        %v449 = vpack.c.b16 %v405, %v403
        %v450 = vpack.c.b16 %v406, %v404
        %v451 = vpack.c.b16 %v409, %v407
        %v452 = vpack.c.b16 %v410, %v408
        %v453 = vpack.c.b16 %v413, %v411
        %v454 = vpack.c.b16 %v414, %v412
        %v455 = vpack.c.b16 %v417, %v415
        %v456 = vpack.c.b16 %v418, %v416
        %v457 = vpack.c.b16 %v421, %v419
        %v458 = vpack.c.b16 %v422, %v420
        %v459 = vpack.c.b16 %v425, %v423
        %v460 = vpack.c.b16 %v426, %v424
        %v461 = vpack.c.b16 %v429, %v427
        %v462 = vpack.c.b16 %v430, %v428
        %v527 = vunpack.c.l.b16 %v239
        %v528 = vunpack.c.l.b16 %v240
        %v529 = vunpack.c.l.b16 %v241
        %v530 = vunpack.c.l.b16 %v242
        %v531 = vunpack.c.l.b16 %v243
        %v532 = vunpack.c.l.b16 %v244
        %v533 = vunpack.c.l.b16 %v245
        %v534 = vunpack.c.l.b16 %v246
        %v535 = vunpack.c.l.b16 %v247
        %v536 = vunpack.c.l.b16 %v248
        %v537 = vunpack.c.l.b16 %v249
        %v538 = vunpack.c.l.b16 %v250
        %v539 = vunpack.c.l.b16 %v251
        %v540 = vunpack.c.l.b16 %v252
        %v541 = vunpack.c.l.b16 %v253
        %v542 = vunpack.c.l.b16 %v254
        %v543 = vunpack.c.l.b16 %v255
        %v544 = vunpack.c.l.b16 %v256
        %v545 = vunpack.c.l.b16 %v257
        %v546 = vunpack.c.l.b16 %v258
        %v547 = vunpack.c.l.b16 %v259
        %v548 = vunpack.c.l.b16 %v260
        %v549 = vunpack.c.l.b16 %v261
        %v550 = vunpack.c.l.b16 %v262
        %v551 = vunpack.c.l.b16 %v263
        %v552 = vunpack.c.l.b16 %v264
        %v553 = vunpack.c.l.b16 %v265
        %v554 = vunpack.c.l.b16 %v266
        %v555 = vunpack.c.l.b16 %v267
        %v556 = vunpack.c.l.b16 %v268
        %v557 = vunpack.c.l.b16 %v269
        %v558 = vunpack.c.l.b16 %v270
        %v559 = vpack.c.b16 %v528, %v527
        %v560 = vpack.c.b16 %v530, %v529
        %v561 = vpack.c.b16 %v532, %v531
        %v562 = vpack.c.b16 %v534, %v533
        %v563 = vpack.c.b16 %v536, %v535
        %v564 = vpack.c.b16 %v538, %v537
        %v565 = vpack.c.b16 %v540, %v539
        %v566 = vpack.c.b16 %v542, %v541
        %v567 = vpack.c.b16 %v544, %v543
        %v568 = vpack.c.b16 %v546, %v545
        %v569 = vpack.c.b16 %v548, %v547
        %v570 = vpack.c.b16 %v550, %v549
        %v571 = vpack.c.b16 %v552, %v551
        %v572 = vpack.c.b16 %v554, %v553
        %v573 = vpack.c.b16 %v556, %v555
        %v574 = vpack.c.b16 %v558, %v557
        %591 = vmatprep.subr.bf16.mxu0 0
        %592 = vmatpush1.bf16.msra.mxu0 %v559
        %593 = vmatprep.subr.bf16.mxu0 0
        %594 = vmatpush1.bf16.msra.mxu0 %v560
        %595 = vmatprep.subr.bf16.mxu0 0
        %596 = vmatpush1.bf16.msra.mxu0 %v561
        %597 = vmatprep.subr.bf16.mxu0 0
        %598 = vmatpush1.bf16.msra.mxu0 %v562
        %599 = vmatprep.subr.bf16.mxu0 0
        %600 = vmatpush1.bf16.msra.mxu0 %v563
        %601 = vmatprep.subr.bf16.mxu0 0
        %602 = vmatpush1.bf16.msra.mxu0 %v564
        %603 = vmatprep.subr.bf16.mxu0 0
        %604 = vmatpush1.bf16.msra.mxu0 %v565
        %605 = vmatprep.subr.bf16.mxu0 0
        %606 = vmatpush1.bf16.msra.mxu0 %v566
        %607 = vmatprep.subr.bf16.mxu0 0
        %608 = vmatpush1.bf16.msra.mxu0 %v567
        %609 = vmatprep.subr.bf16.mxu0 0
        %610 = vmatpush1.bf16.msra.mxu0 %v568
        %611 = vmatprep.subr.bf16.mxu0 0
        %612 = vmatpush1.bf16.msra.mxu0 %v569
        %613 = vmatprep.subr.bf16.mxu0 0
        %614 = vmatpush1.bf16.msra.mxu0 %v570
        %615 = vmatprep.subr.bf16.mxu0 0
        %616 = vmatpush1.bf16.msra.mxu0 %v571
        %617 = vmatprep.subr.bf16.mxu0 0
        %618 = vmatpush1.bf16.msra.mxu0 %v572
        %619 = vmatprep.subr.bf16.mxu0 0
        %620 = vmatpush1.bf16.msra.mxu0 %v573
        %621 = vmatprep.subr.bf16.mxu0 0
        %622 = vmatpush1.bf16.msra.mxu0 %v574
        %623 = vmatprep.mubr.bf16.mxu0 %v432
        %624 = vmatmul.mubr.bf16.gmra.mrb[0].mxu0 %v431
        %v625 = vpop.f32.mrb[0].mxu0
        %v626 = vadd.f32 0.0, %v625
        %v627 = vpop.f32.mrb[0].mxu0
        %v628 = vpop.f32.mrb[0].mxu0
        %v629 = vadd.f32 0.0, %v628
        %v630 = vpop.f32.mrb[0].mxu0
        %631 = vmatprep.mubr.bf16.mxu0 %v434
        %632 = vmatmul.mubr.bf16.gmra.mrb[0].mxu0 %v433
        %v633 = vpop.f32.mrb[0].mxu0
        %v634 = vadd.f32 0.0, %v633
        %v635 = vpop.f32.mrb[0].mxu0
        %v636 = vpop.f32.mrb[0].mxu0
        %v637 = vadd.f32 0.0, %v636
        %v638 = vpop.f32.mrb[0].mxu0
        %639 = vmatprep.mubr.bf16.mxu0 %v436
        %640 = vmatmul.mubr.bf16.gmra.mrb[0].mxu0 %v435
        %v641 = vpop.f32.mrb[0].mxu0
        %v642 = vadd.f32 0.0, %v641
        %v643 = vpop.f32.mrb[0].mxu0
        %v644 = vpop.f32.mrb[0].mxu0
        %v645 = vadd.f32 0.0, %v644
        %v646 = vpop.f32.mrb[0].mxu0
        %647 = vmatprep.mubr.bf16.mxu0 %v438
        %648 = vmatmul.mubr.bf16.gmra.mrb[0].mxu0 %v437
        %v649 = vpop.f32.mrb[0].mxu0
        %v650 = vadd.f32 0.0, %v649
        %v651 = vpop.f32.mrb[0].mxu0
        %v652 = vpop.f32.mrb[0].mxu0
        %v653 = vadd.f32 0.0, %v652
        %v654 = vpop.f32.mrb[0].mxu0
        %655 = vmatprep.mubr.bf16.mxu0 %v440
        %656 = vmatmul.mubr.bf16.gmra.mrb[0].mxu0 %v439
        %v657 = vpop.f32.mrb[0].mxu0
        %v658 = vadd.f32 0.0, %v657
        %v659 = vpop.f32.mrb[0].mxu0
        %v660 = vpop.f32.mrb[0].mxu0
        %v661 = vadd.f32 0.0, %v660
        %v662 = vpop.f32.mrb[0].mxu0
        %663 = vmatprep.mubr.bf16.mxu0 %v442
        %664 = vmatmul.mubr.bf16.gmra.mrb[0].mxu0 %v441
        %v665 = vpop.f32.mrb[0].mxu0
        %v666 = vadd.f32 0.0, %v665
        %v667 = vpop.f32.mrb[0].mxu0
        %v668 = vpop.f32.mrb[0].mxu0
        %v669 = vadd.f32 0.0, %v668
        %v670 = vpop.f32.mrb[0].mxu0
        %671 = vmatprep.mubr.bf16.mxu0 %v444
        %672 = vmatmul.mubr.bf16.gmra.mrb[0].mxu0 %v443
        %v673 = vpop.f32.mrb[0].mxu0
        %v674 = vadd.f32 0.0, %v673
        %v675 = vpop.f32.mrb[0].mxu0
        %v676 = vpop.f32.mrb[0].mxu0
        %v677 = vadd.f32 0.0, %v676
        %v678 = vpop.f32.mrb[0].mxu0
        %679 = vmatprep.mubr.bf16.mxu0 %v446
        %680 = vmatmul.mubr.bf16.gmra.mrb[0].mxu0 %v445
        %v681 = vpop.f32.mrb[0].mxu0
        %v682 = vadd.f32 0.0, %v681
        %v683 = vpop.f32.mrb[0].mxu0
        %v684 = vpop.f32.mrb[0].mxu0
        %v685 = vadd.f32 0.0, %v684
        %v686 = vpop.f32.mrb[0].mxu0
        %687 = vmatprep.mubr.bf16.mxu0 %v448
        %688 = vmatmul.mubr.bf16.gmra.mrb[0].mxu0 %v447
        %v689 = vpop.f32.mrb[0].mxu0
        %v690 = vadd.f32 0.0, %v689
        %v691 = vpop.f32.mrb[0].mxu0
        %v692 = vpop.f32.mrb[0].mxu0
        %v693 = vadd.f32 0.0, %v692
        %v694 = vpop.f32.mrb[0].mxu0
        %695 = vmatprep.mubr.bf16.mxu0 %v450
        %696 = vmatmul.mubr.bf16.gmra.mrb[0].mxu0 %v449
        %v697 = vpop.f32.mrb[0].mxu0
        %v698 = vadd.f32 0.0, %v697
        %v699 = vpop.f32.mrb[0].mxu0
        %v700 = vpop.f32.mrb[0].mxu0
        %v701 = vadd.f32 0.0, %v700
        %v702 = vpop.f32.mrb[0].mxu0
        %703 = vmatprep.mubr.bf16.mxu0 %v452
        %704 = vmatmul.mubr.bf16.gmra.mrb[0].mxu0 %v451
        %v705 = vpop.f32.mrb[0].mxu0
        %v706 = vadd.f32 0.0, %v705
        %v707 = vpop.f32.mrb[0].mxu0
        %v708 = vpop.f32.mrb[0].mxu0
        %v709 = vadd.f32 0.0, %v708
        %v710 = vpop.f32.mrb[0].mxu0
        %711 = vmatprep.mubr.bf16.mxu0 %v454
        %712 = vmatmul.mubr.bf16.gmra.mrb[0].mxu0 %v453
        %v713 = vpop.f32.mrb[0].mxu0
        %v714 = vadd.f32 0.0, %v713
        %v715 = vpop.f32.mrb[0].mxu0
        %v716 = vpop.f32.mrb[0].mxu0
        %v717 = vadd.f32 0.0, %v716
        %v718 = vpop.f32.mrb[0].mxu0
        %719 = vmatprep.mubr.bf16.mxu0 %v456
        %720 = vmatmul.mubr.bf16.gmra.mrb[0].mxu0 %v455
        %v721 = vpop.f32.mrb[0].mxu0
        %v722 = vadd.f32 0.0, %v721
        %v723 = vpop.f32.mrb[0].mxu0
        %v724 = vpop.f32.mrb[0].mxu0
        %v725 = vadd.f32 0.0, %v724
        %v726 = vpop.f32.mrb[0].mxu0
        %727 = vmatprep.mubr.bf16.mxu0 %v458
        %728 = vmatmul.mubr.bf16.gmra.mrb[0].mxu0 %v457
        %v729 = vpop.f32.mrb[0].mxu0
        %v730 = vadd.f32 0.0, %v729
        %v731 = vpop.f32.mrb[0].mxu0
        %v732 = vpop.f32.mrb[0].mxu0
        %v733 = vadd.f32 0.0, %v732
        %v734 = vpop.f32.mrb[0].mxu0
        %735 = vmatprep.mubr.bf16.mxu0 %v460
        %736 = vmatmul.mubr.bf16.gmra.mrb[0].mxu0 %v459
        %v737 = vpop.f32.mrb[0].mxu0
        %v738 = vadd.f32 0.0, %v737
        %v739 = vpop.f32.mrb[0].mxu0
        %v740 = vpop.f32.mrb[0].mxu0
        %v741 = vadd.f32 0.0, %v740
        %v742 = vpop.f32.mrb[0].mxu0
        %743 = vmatprep.mubr.bf16.mxu0 %v462
        %744 = vmatmul.mubr.bf16.gmra.mrb[0].mxu0 %v461
        %v745 = vpop.f32.mrb[0].mxu0
        %v746 = vadd.f32 0.0, %v745
        %v747 = vpop.f32.mrb[0].mxu0
        %v748 = vpop.f32.mrb[0].mxu0
        %v749 = vadd.f32 0.0, %v748
        %v750 = vpop.f32.mrb[0].mxu0
        %751 = vdwg.mxu0
        %v752 = vadd.f32 %v271, %v626
        %v753 = vadd.f32 %v272, %v629
        %v754 = vadd.f32 %v273, %v634
        %v755 = vadd.f32 %v274, %v637
        %v756 = vadd.f32 %v275, %v642
        %v757 = vadd.f32 %v276, %v645
        %v758 = vadd.f32 %v277, %v650
        %v759 = vadd.f32 %v278, %v653
        %v760 = vadd.f32 %v279, %v658
        %v761 = vadd.f32 %v280, %v661
        %v762 = vadd.f32 %v281, %v666
        %v763 = vadd.f32 %v282, %v669
        %v764 = vadd.f32 %v283, %v674
        %v765 = vadd.f32 %v284, %v677
        %v766 = vadd.f32 %v285, %v682
        %v767 = vadd.f32 %v286, %v685
        %v768 = vadd.f32 %v287, %v690
        %v769 = vadd.f32 %v288, %v693
        %v770 = vadd.f32 %v289, %v698
        %v771 = vadd.f32 %v290, %v701
        %v772 = vadd.f32 %v291, %v706
        %v773 = vadd.f32 %v292, %v709
        %v774 = vadd.f32 %v293, %v714
        %v775 = vadd.f32 %v294, %v717
        %v776 = vadd.f32 %v295, %v722
        %v777 = vadd.f32 %v296, %v725
        %v778 = vadd.f32 %v297, %v730
        %v779 = vadd.f32 %v298, %v733
        %v780 = vadd.f32 %v299, %v738
        %v781 = vadd.f32 %v300, %v741
        %v782 = vadd.f32 %v301, %v746
        %v783 = vadd.f32 %v302, %v749
        %784 = vst [vmem:[#allocation2] sm:$0xff] %v752
        %785 = vst [vmem:[#allocation2 + $0x8] sm:$0xff] %v753
        %786 = vst [vmem:[#allocation2 + $0x10] sm:$0xff] %v754
        %787 = vst [vmem:[#allocation2 + $0x18] sm:$0xff] %v755
        %788 = vst [vmem:[#allocation2 + $0x20] sm:$0xff] %v756
        %789 = vst [vmem:[#allocation2 + $0x28] sm:$0xff] %v757
        %790 = vst [vmem:[#allocation2 + $0x30] sm:$0xff] %v758
        %791 = vst [vmem:[#allocation2 + $0x38] sm:$0xff] %v759
        %792 = vst [vmem:[#allocation2 + $0x40] sm:$0xff] %v760
        %793 = vst [vmem:[#allocation2 + $0x48] sm:$0xff] %v761
        %794 = vst [vmem:[#allocation2 + $0x50] sm:$0xff] %v762
        %795 = vst [vmem:[#allocation2 + $0x58] sm:$0xff] %v763
        %796 = vst [vmem:[#allocation2 + $0x60] sm:$0xff] %v764
        %797 = vst [vmem:[#allocation2 + $0x68] sm:$0xff] %v765
        %798 = vst [vmem:[#allocation2 + $0x70] sm:$0xff] %v766
        %799 = vst [vmem:[#allocation2 + $0x78] sm:$0xff] %v767
        %800 = vst [vmem:[#allocation2 + $0x80] sm:$0xff] %v768
        %801 = vst [vmem:[#allocation2 + $0x88] sm:$0xff] %v769
        %802 = vst [vmem:[#allocation2 + $0x90] sm:$0xff] %v770
        %803 = vst [vmem:[#allocation2 + $0x98] sm:$0xff] %v771
        %804 = vst [vmem:[#allocation2 + $0xa0] sm:$0xff] %v772
        %805 = vst [vmem:[#allocation2 + $0xa8] sm:$0xff] %v773
        %806 = vst [vmem:[#allocation2 + $0xb0] sm:$0xff] %v774
        %807 = vst [vmem:[#allocation2 + $0xb8] sm:$0xff] %v775
        %808 = vst [vmem:[#allocation2 + $0xc0] sm:$0xff] %v776
        %809 = vst [vmem:[#allocation2 + $0xc8] sm:$0xff] %v777
        %810 = vst [vmem:[#allocation2 + $0xd0] sm:$0xff] %v778
        %811 = vst [vmem:[#allocation2 + $0xd8] sm:$0xff] %v779
        %812 = vst [vmem:[#allocation2 + $0xe0] sm:$0xff] %v780
        %813 = vst [vmem:[#allocation2 + $0xe8] sm:$0xff] %v781
        %814 = vst [vmem:[#allocation2 + $0xf0] sm:$0xff] %v782
        %815 = vst [vmem:[#allocation2 + $0xf8] sm:$0xff] %v783
        %p816 = scmp.eq.s32.totalorder %s25, 1
        // Predicated region
        $region41: #{tpu_custom_call.1} parent=27 // pred_check
          %p817 = pneg %p816
        $region42: #{tpu_custom_call.1} parent=27 // pred_check_branch
          %819 = sbr.rel (%p817) target = $region44
        $region43: #{tpu_custom_call.1} parent=27 // pred_region
          %v820 = vld [vmem:[#allocation2] sm:$0xff]
          %v821 = vld [vmem:[#allocation2 + $0x8] sm:$0xff]
          %v822 = vld [vmem:[#allocation2 + $0x10] sm:$0xff]
          %v823 = vld [vmem:[#allocation2 + $0x18] sm:$0xff]
          %v824 = vld [vmem:[#allocation2 + $0x20] sm:$0xff]
          %v825 = vld [vmem:[#allocation2 + $0x28] sm:$0xff]
          %v826 = vld [vmem:[#allocation2 + $0x30] sm:$0xff]
          %v827 = vld [vmem:[#allocation2 + $0x38] sm:$0xff]
          %v828 = vld [vmem:[#allocation2 + $0x40] sm:$0xff]
          %v829 = vld [vmem:[#allocation2 + $0x48] sm:$0xff]
          %v830 = vld [vmem:[#allocation2 + $0x50] sm:$0xff]
          %v831 = vld [vmem:[#allocation2 + $0x58] sm:$0xff]
          %v832 = vld [vmem:[#allocation2 + $0x60] sm:$0xff]
          %v833 = vld [vmem:[#allocation2 + $0x68] sm:$0xff]
          %v834 = vld [vmem:[#allocation2 + $0x70] sm:$0xff]
          %v835 = vld [vmem:[#allocation2 + $0x78] sm:$0xff]
          %v836 = vld [vmem:[#allocation2 + $0x80] sm:$0xff]
          %v837 = vld [vmem:[#allocation2 + $0x88] sm:$0xff]
          %v838 = vld [vmem:[#allocation2 + $0x90] sm:$0xff]
          %v839 = vld [vmem:[#allocation2 + $0x98] sm:$0xff]
          %v840 = vld [vmem:[#allocation2 + $0xa0] sm:$0xff]
          %v841 = vld [vmem:[#allocation2 + $0xa8] sm:$0xff]
          %v842 = vld [vmem:[#allocation2 + $0xb0] sm:$0xff]
          %v843 = vld [vmem:[#allocation2 + $0xb8] sm:$0xff]
          %v844 = vld [vmem:[#allocation2 + $0xc0] sm:$0xff]
          %v845 = vld [vmem:[#allocation2 + $0xc8] sm:$0xff]
          %v846 = vld [vmem:[#allocation2 + $0xd0] sm:$0xff]
          %v847 = vld [vmem:[#allocation2 + $0xd8] sm:$0xff]
          %v848 = vld [vmem:[#allocation2 + $0xe0] sm:$0xff]
          %v849 = vld [vmem:[#allocation2 + $0xe8] sm:$0xff]
          %v850 = vld [vmem:[#allocation2 + $0xf0] sm:$0xff]
          %v851 = vld [vmem:[#allocation2 + $0xf8] sm:$0xff]
          %v852 = vpack.c.bf16 %v821, %v820
          %v853 = vpack.c.bf16 %v823, %v822
          %v854 = vpack.c.bf16 %v825, %v824
          %v855 = vpack.c.bf16 %v827, %v826
          %v856 = vpack.c.bf16 %v829, %v828
          %v857 = vpack.c.bf16 %v831, %v830
          %v858 = vpack.c.bf16 %v833, %v832
          %v859 = vpack.c.bf16 %v835, %v834
          %v860 = vpack.c.bf16 %v837, %v836
          %v861 = vpack.c.bf16 %v839, %v838
          %v862 = vpack.c.bf16 %v841, %v840
          %v863 = vpack.c.bf16 %v843, %v842
          %v864 = vpack.c.bf16 %v845, %v844
          %v865 = vpack.c.bf16 %v847, %v846
          %v866 = vpack.c.bf16 %v849, %v848
          %v867 = vpack.c.bf16 %v851, %v850
          %v884 = vunpack.c.l.b16 %v852
          %v885 = vunpack.c.h.b16 %v852
          %v886 = vunpack.c.l.b16 %v853
          %v887 = vunpack.c.h.b16 %v853
          %v888 = vunpack.c.l.b16 %v854
          %v889 = vunpack.c.h.b16 %v854
          %v890 = vunpack.c.l.b16 %v855
          %v891 = vunpack.c.h.b16 %v855
          %v892 = vunpack.c.l.b16 %v856
          %v893 = vunpack.c.h.b16 %v856
          %v894 = vunpack.c.l.b16 %v857
          %v895 = vunpack.c.h.b16 %v857
          %v896 = vunpack.c.l.b16 %v858
          %v897 = vunpack.c.h.b16 %v858
          %v898 = vunpack.c.l.b16 %v859
          %v899 = vunpack.c.h.b16 %v859
          %v900 = vunpack.c.l.b16 %v860
          %v901 = vunpack.c.h.b16 %v860
          %v902 = vunpack.c.l.b16 %v861
          %v903 = vunpack.c.h.b16 %v861
          %v904 = vunpack.c.l.b16 %v862
          %v905 = vunpack.c.h.b16 %v862
          %v906 = vunpack.c.l.b16 %v863
          %v907 = vunpack.c.h.b16 %v863
          %v908 = vunpack.c.l.b16 %v864
          %v909 = vunpack.c.h.b16 %v864
          %v910 = vunpack.c.l.b16 %v865
          %v911 = vunpack.c.h.b16 %v865
          %v912 = vunpack.c.l.b16 %v866
          %v913 = vunpack.c.h.b16 %v866
          %v914 = vunpack.c.l.b16 %v867
          %v915 = vunpack.c.h.b16 %v867
          %v916 = vpack.c.b16 %v884, %v884
          %v917 = vpack.c.b16 %v885, %v885
          %v918 = vpack.c.b16 %v886, %v886
          %v919 = vpack.c.b16 %v887, %v887
          %v920 = vpack.c.b16 %v888, %v888
          %v921 = vpack.c.b16 %v889, %v889
          %v922 = vpack.c.b16 %v890, %v890
          %v923 = vpack.c.b16 %v891, %v891
          %v924 = vpack.c.b16 %v892, %v892
          %v925 = vpack.c.b16 %v893, %v893
          %v926 = vpack.c.b16 %v894, %v894
          %v927 = vpack.c.b16 %v895, %v895
          %v928 = vpack.c.b16 %v896, %v896
          %v929 = vpack.c.b16 %v897, %v897
          %v930 = vpack.c.b16 %v898, %v898
          %v931 = vpack.c.b16 %v899, %v899
          %v932 = vpack.c.b16 %v900, %v900
          %v933 = vpack.c.b16 %v901, %v901
          %v934 = vpack.c.b16 %v902, %v902
          %v935 = vpack.c.b16 %v903, %v903
          %v936 = vpack.c.b16 %v904, %v904
          %v937 = vpack.c.b16 %v905, %v905
          %v938 = vpack.c.b16 %v906, %v906
          %v939 = vpack.c.b16 %v907, %v907
          %v940 = vpack.c.b16 %v908, %v908
          %v941 = vpack.c.b16 %v909, %v909
          %v942 = vpack.c.b16 %v910, %v910
          %v943 = vpack.c.b16 %v911, %v911
          %v944 = vpack.c.b16 %v912, %v912
          %v945 = vpack.c.b16 %v913, %v913
          %v946 = vpack.c.b16 %v914, %v914
          %v947 = vpack.c.b16 %v915, %v915
          %980 = vst [vmem:[%s193] sm:$0xf] %v916
          %981 = vst [vmem:[%s193 + $0x4] sm:$0xf] %v917
          %982 = vst [vmem:[%s193 + $0x8] sm:$0xf] %v918
          %983 = vst [vmem:[%s193 + $0xc] sm:$0xf] %v919
          %984 = vst [vmem:[%s193 + $0x10] sm:$0xf] %v920
          %985 = vst [vmem:[%s193 + $0x14] sm:$0xf] %v921
          %986 = vst [vmem:[%s193 + $0x18] sm:$0xf] %v922
          %987 = vst [vmem:[%s193 + $0x1c] sm:$0xf] %v923
          %988 = vst [vmem:[%s193 + $0x20] sm:$0xf] %v924
          %989 = vst [vmem:[%s193 + $0x24] sm:$0xf] %v925
          %990 = vst [vmem:[%s193 + $0x28] sm:$0xf] %v926
          %991 = vst [vmem:[%s193 + $0x2c] sm:$0xf] %v927
          %992 = vst [vmem:[%s193 + $0x30] sm:$0xf] %v928
          %993 = vst [vmem:[%s193 + $0x34] sm:$0xf] %v929
          %994 = vst [vmem:[%s193 + $0x38] sm:$0xf] %v930
          %995 = vst [vmem:[%s193 + $0x3c] sm:$0xf] %v931
          %996 = vst [vmem:[%s193 + $0x40] sm:$0xf] %v932
          %997 = vst [vmem:[%s193 + $0x44] sm:$0xf] %v933
          %998 = vst [vmem:[%s193 + $0x48] sm:$0xf] %v934
          %999 = vst [vmem:[%s193 + $0x4c] sm:$0xf] %v935
          %1000 = vst [vmem:[%s193 + $0x50] sm:$0xf] %v936
          %1001 = vst [vmem:[%s193 + $0x54] sm:$0xf] %v937
          %1002 = vst [vmem:[%s193 + $0x58] sm:$0xf] %v938
          %1003 = vst [vmem:[%s193 + $0x5c] sm:$0xf] %v939
          %1004 = vst [vmem:[%s193 + $0x60] sm:$0xf] %v940
          %1005 = vst [vmem:[%s193 + $0x64] sm:$0xf] %v941
          %1006 = vst [vmem:[%s193 + $0x68] sm:$0xf] %v942
          %1007 = vst [vmem:[%s193 + $0x6c] sm:$0xf] %v943
          %1008 = vst [vmem:[%s193 + $0x70] sm:$0xf] %v944
          %1009 = vst [vmem:[%s193 + $0x74] sm:$0xf] %v945
          %1010 = vst [vmem:[%s193 + $0x78] sm:$0xf] %v946
          %1011 = vst [vmem:[%s193 + $0x7c] sm:$0xf] %v947
        $region44: #{tpu_custom_call.1} parent=27 // pred_fallthru
          _
        %s1012 = sand.u32 %s89, 1
        %s1013 = scalar_lea.sflag [#allocation5], %s1012
        %s1014 = sand.u32 %s89, 1
        %s1015 = smul.addr %s1014, 128
        %s1016 = scalar_lea.vmem [#allocation8], %s1015
        // Predicated region
        $region45: #{tpu_custom_call.1} parent=27 // pred_check
          %p1017 = pneg %p99
        $region46: #{tpu_custom_call.1} parent=27 // pred_check_branch
          %1019 = sbr.rel (%p1017) target = $region48
        $region47: #{tpu_custom_call.1} parent=27 // pred_region
          %s1020 = smul.u32 32, %s24
          %s1022 = ssub.s32 2048, 2048
          %1023 = vsyncadd %s1013, %s1022
          %s1024 = smul.addr %s1020, 64
          %s1025 = scalar_lea.hbm %s2, %s1024
          %s1026 = sshll.u32 %s1016, 4
          %s1027 = int_to_ptr.vmem [resolvable:$true] %s1026
          %1032 = dma.vmem_to_hbm [thread:$0]  %s1027, 2048, %s1025, %s1013, 64, 64, 4
        $region48: #{tpu_custom_call.1} parent=27 // pred_fallthru
          _
      $region28: #{tpu_custom_call.1} parent=5 // pred_fallthru
        _
      %p1033 = scmp.le.s32.totalorder 2, %s15
      // Predicated region
      $region49: #{tpu_custom_call.1} parent=5 // pred_check
        %p1034 = pneg %p1033
      $region50: #{tpu_custom_call.1} parent=5 // pred_check_branch
        %1036 = sbr.rel (%p1034) target = $region52
      $region51: #{tpu_custom_call.1} parent=5 // pred_region
        %s1037 = ssub.s32 %s15, 2
        // Predicated region
        $region53: #{tpu_custom_call.1} parent=51 // pred_check
          %p1038 = pneg %p105
        $region54: #{tpu_custom_call.1} parent=51 // pred_check_branch
          %1040 = sbr.rel (%p1038) target = $region56
        $region55: #{tpu_custom_call.1} parent=51 // pred_region
          %s1041 = sand.u32 %s90, 1
          %s1042 = scalar_lea.sflag [#allocation5], %s1041
          %s1043 = sand.u32 %s90, 1
          %s1044 = smul.addr %s1043, 128
          %s1045 = scalar_lea.vmem [#allocation8], %s1044
          %1046 = dma.done %s1042, 2048
        $region56: #{tpu_custom_call.1} parent=51 // pred_fallthru
          _
      $region52: #{tpu_custom_call.1} parent=5 // pred_fallthru
        _
    $region6: #{tpu_custom_call.1} parent=1 // loop_footer
      %s19 = sadd.s32 1, %s15
    $region7: #{tpu_custom_call.1} parent=1 // loop_footer_branch
      %14 = sbr.rel target = $region3
    $region8: #{tpu_custom_call.1} parent=1 // loop_exit
      _
    %1047 = vsyncpa [#allocation4], 1
    %s1048 = scalar_lea.sflag [#allocation4], 1
    %1049 = vsyncpa %s1048, 1
    %1050 = vsyncpa [#allocation7], 1
    %1051 = vsyncpa [#allocation5], 1
    %s1052 = scalar_lea.sflag [#allocation5], 1
    %1053 = vsyncpa %s1052, 1

</llo_original>
